<compile_context>
chip_gen: v5e
topology: v5e:2x2
jax: 0.10.0
libtpu: 0.0.40
codegen_flags: <defaults>
</compile_context>

<pallas_src>
import functools

import jax
import jax.numpy as jnp
from jax.experimental import pallas as pl
from jax.experimental.pallas import tpu as pltpu


def build_pe_buffer(d_model: int, max_len: int = 1000) -> jnp.ndarray:
    """Deterministic buffer setup; matches the nn.Module __init__ (even d_model)."""
    if d_model % 2 != 0:
        # The PyTorch reference also fails for odd d_model (cos shape mismatch).
        raise ValueError("d_model must be even")
    position = jnp.arange(0, max_len, dtype=jnp.float32)[:, None]        # (max_len, 1)
    div_term = jnp.power(
        10000.0, -jnp.arange(0, d_model, 2, dtype=jnp.float32) / d_model
    )                                                                     # (d_model/2,)
    angles = position * div_term                                          # (max_len, d/2)
    pe = jnp.zeros((max_len, d_model), dtype=jnp.float32)
    pe = pe.at[:, 0::2].set(jnp.sin(angles))
    pe = pe.at[:, 1::2].set(jnp.cos(angles))
    # pe.unsqueeze(0).transpose(0, 1) -> (max_len, 1, d_model)
    return pe[:, None, :]


def _pe_add_kernel(x_ref, pe_ref, o_ref, *, batch: int):
    # x_ref : (TR, B*D)  lane-dense slab of the input
    # pe_ref: (TR, D)    one pe row per sequence position
    pe = pe_ref[...]
    if batch > 1:
        pe = jnp.tile(pe, (1, batch))   # broadcast over batch along the lane axis
    o_ref[...] = x_ref[...] + pe


def positional_encoding_forward(
    x: jnp.ndarray, pe: jnp.ndarray, *, max_row_tile: int = 512
) -> jnp.ndarray:
    """x: (S, B, D); pe: (max_len, 1, D). Returns x + pe[:S] broadcast over B."""
    S, B, D = x.shape
    x2d = x.reshape(S, B * D)                 # free, contiguous reshape
    pe2d = pe[:S, 0, :].astype(x.dtype)       # (S, D) tiny static slice / dtype decision

    itemsize = x.dtype.itemsize

    # Row tile: as large as possible (amortize ~0.35us per grid step) while the
    # double-buffered working set stays well under v7x's 64 MiB physical VMEM.
    tr = S if S <= max_row_tile else max_row_tile
    if tr != S:
        tr = max(8, (tr // 8) * 8)            # (8, 128) rule: multiple of 8 rows

    def working_set(t):
        # double-buffered x-in + out tiles, plus the double-buffered pe tile
        return 2 * (2 * t * B * D + t * D) * itemsize

    budget = 40 * 1024 * 1024
    while tr != S and tr > 8 and working_set(tr) > budget:
        tr = max(8, (tr // 2 // 8) * 8)

    vmem_limit = int(min(max(working_set(tr) + (4 << 20), 16 << 20), 48 << 20))

    grid = (pl.cdiv(S, tr),)
    kernel = functools.partial(_pe_add_kernel, batch=B)

    out2d = pl.pallas_call(
        kernel,
        out_shape=jax.ShapeDtypeStruct((S, B * D), x.dtype),
        grid=grid,
        in_specs=[
            pl.BlockSpec((tr, B * D), lambda i: (i, 0)),
            pl.BlockSpec((tr, D), lambda i: (i, 0)),
        ],
        out_specs=pl.BlockSpec((tr, B * D), lambda i: (i, 0)),
        compiler_params=pltpu.CompilerParams(
            dimension_semantics=("parallel",),
            vmem_limit_bytes=vmem_limit,
        ),
    )(x2d, pe2d)

    return out2d.reshape(S, B, D)


def positional_encoding_ref(x: jnp.ndarray, pe: jnp.ndarray) -> jnp.ndarray:
    return x + pe[: x.shape[0], :]


if __name__ == "__main__":
    d_model = 32
    max_len = 1000
    seq = 8
    batch = 2

    pe = build_pe_buffer(d_model, max_len)    # (max_len, 1, d_model)

    key = jax.random.PRNGKey(0)
    x = jax.random.normal(key, (seq, batch, d_model), dtype=jnp.float32)

    out = positional_encoding_forward(x, pe)
    out = jax.block_until_ready(out)

    ref = positional_encoding_ref(x, pe)
    assert out.shape == (seq, batch, d_model)
    assert jnp.allclose(out, ref, atol=1e-6, rtol=1e-6)

    print("KERNEL_OK")
</pallas_src>

<mosaic_0001>
module attributes {stable_mosaic.version = 11 : i64} {
  func.func @_pe_add_kernel(%arg0: i32, %arg1: memref<8x64xf32, #tpu.memory_space<vmem>>, %arg2: memref<8x32xf32, #tpu.memory_space<vmem>>, %arg3: memref<8x64xf32, #tpu.memory_space<vmem>>) attributes {dimension_semantics = [#tpu.dimension_semantics<parallel>], iteration_bounds = array<i64: 1>, scalar_prefetch = 0 : i64, scratch_operands = 0 : i64, tpu.core_type = #tpu.core_type<tc>, window_params = [{transform_indices = @transform_0, window_bounds = array<i64: 8, 64>}, {transform_indices = @transform_1, window_bounds = array<i64: 8, 32>}, {transform_indices = @transform_2, window_bounds = array<i64: 8, 64>}]} {
    %c0 = arith.constant 0 : index
    %c0_0 = arith.constant 0 : index
    %0 = vector.load %arg2[%c0, %c0_0] : memref<8x32xf32, #tpu.memory_space<vmem>>, vector<8x32xf32>
    %1 = tpu.concatenate %0, %0 in 1 : vector<8x32xf32>, vector<8x32xf32> -> vector<8x64xf32>
    %c0_1 = arith.constant 0 : index
    %c0_2 = arith.constant 0 : index
    %2 = vector.load %arg1[%c0_1, %c0_2] : memref<8x64xf32, #tpu.memory_space<vmem>>, vector<8x64xf32>
    %3 = arith.addf %2, %1 : vector<8x64xf32>
    %c0_3 = arith.constant 0 : index
    %c0_4 = arith.constant 0 : index
    %4 = vector.load %arg3[%c0_3, %c0_4] : memref<8x64xf32, #tpu.memory_space<vmem>>, vector<8x64xf32>
    tpu.vector_store %arg3[%c0_3, %c0_4], %3 {strides = array<i32>} : memref<8x64xf32, #tpu.memory_space<vmem>>, vector<8x64xf32>,
    return
  }
  func.func @transform_0(%arg0: i32) -> (i32, i32) {
    %c0_i32 = arith.constant 0 : i32
    %c0_i32_0 = arith.constant 0 : i32
    return %arg0, %c0_i32 : i32, i32
  }
  func.func @transform_1(%arg0: i32) -> (i32, i32) {
    %c0_i32 = arith.constant 0 : i32
    %c0_i32_0 = arith.constant 0 : i32
    return %arg0, %c0_i32 : i32, i32
  }
  func.func @transform_2(%arg0: i32) -> (i32, i32) {
    %c0_i32 = arith.constant 0 : i32
    %c0_i32_0 = arith.constant 0 : i32
    return %arg0, %c0_i32 : i32, i32
  }
}

</mosaic_0001>

<llo_original>
// kernel: tpu_custom_call.1
$region0: #{tpu_custom_call.1}
  #allocation0 [shape = 'u32[]', space=smem, size = 0x4, offset = 0x4, fixed_abs, tag = 'smem constant byte address 0x4 - core index']
  #allocation1 [shape = 'u32[72,128]{1,0:T(1,128)}', space=vmem, size = 0x9000, scoped, tag = 'internal scratch']
  %s0 = inlined_call_operand.hbm [shape: f32[8,64], index: 0, kind: input, shape index: {}]
  %s1 = inlined_call_operand.hbm [shape: f32[8,32], index: 1, kind: input, shape index: {}]
  %s2 = inlined_call_operand.hbm [shape: f32[8,64], index: 2, kind: output, shape index: {}]
  %s3 = sld [smem:[#allocation0]]
  $region26: #{tpu_custom_call.1} parent=0
    _
  %s5 = ssub.s32 1, %s3
  %s6 = scalar_select 0, %s5, %s3
  $region1: #{tpu_custom_call.1} parent=0
    #allocation2 [shape = 'u8[4096]{0}', space=vmem, size = 0x1000, scoped, tag = 'input window, operand 0, single buffered']
    #allocation3 [shape = 's32[1]{0}', space=sflag, size = 0x4, scoped, tag = 'scoped memory for tpu_custom_call.1']
    #allocation4 [shape = 's32[1]{0}', space=sflag, size = 0x4, scoped, tag = 'scoped memory for tpu_custom_call.1']
    #allocation5 [shape = 'u8[4096]{0}', space=vmem, size = 0x1000, scoped, tag = 'input window, operand 1, single buffered']
    #allocation6 [shape = 's32[1]{0}', space=sflag, size = 0x4, scoped, tag = 'scoped memory for tpu_custom_call.1']
    #allocation7 [shape = 'u8[4096]{0}', space=vmem, size = 0x1000, scoped, tag = 'output window, operand 0, single buffered']
    %7 = vsyncpa [#allocation3], 0
    %8 = vsyncpa [#allocation6], 0
    %9 = vsyncpa [#allocation4], 0
    // Predicated region
    $region2: #{tpu_custom_call.1} parent=1 // pred_check
      _
    $region3: #{tpu_custom_call.1} parent=1 // pred_check_branch
      %11 = sbr.rel (0) target = $region5
    $region4: #{tpu_custom_call.1} parent=1 // pred_region
      %13 = vsyncadd [#allocation3], 0
      %s15 = sshll.u32 %s0, 4
      %s16 = int_to_ptr.hbm [resolvable:$true] %s15
      %s17 = sshll.u32 [#allocation2], 4
      %s18 = int_to_ptr.vmem [resolvable:$true] %s17
      %20 = dma.hbm_to_vmem [thread:$0]  %s16, 128, %s18, [#allocation3]
    $region5: #{tpu_custom_call.1} parent=1 // pred_fallthru
      _
    // Predicated region
    $region6: #{tpu_custom_call.1} parent=1 // pred_check
      _
    $region7: #{tpu_custom_call.1} parent=1 // pred_check_branch
      %22 = sbr.rel (0) target = $region9
    $region8: #{tpu_custom_call.1} parent=1 // pred_region
      %24 = vsyncadd [#allocation6], 0
      %s26 = sshll.u32 %s1, 4
      %s27 = int_to_ptr.hbm [resolvable:$true] %s26
      %s28 = sshll.u32 [#allocation5], 4
      %s29 = int_to_ptr.vmem [resolvable:$true] %s28
      %31 = dma.hbm_to_vmem [thread:$0]  %s27, 128, %s29, [#allocation6]
    $region9: #{tpu_custom_call.1} parent=1 // pred_fallthru
      _
    // Predicated region
    $region10: #{tpu_custom_call.1} parent=1 // pred_check
      _
    $region11: #{tpu_custom_call.1} parent=1 // pred_check_branch
      %33 = sbr.rel (0) target = $region13
    $region12: #{tpu_custom_call.1} parent=1 // pred_region
      %35 = dma.done [#allocation3], 128
    $region13: #{tpu_custom_call.1} parent=1 // pred_fallthru
      _
    // Predicated region
    $region14: #{tpu_custom_call.1} parent=1 // pred_check
      _
    $region15: #{tpu_custom_call.1} parent=1 // pred_check_branch
      %37 = sbr.rel (0) target = $region17
    $region16: #{tpu_custom_call.1} parent=1 // pred_region
      %39 = dma.done [#allocation6], 128
    $region17: #{tpu_custom_call.1} parent=1 // pred_fallthru
      _
    %v40 = vld [vmem:[#allocation5] sm:$0xff]
    %42 = vrot.lane.b32.xlu0 %v40, 32
    %v43 = vpop.permute.xlu0 %42
    %vm45 = vcmask 261120
    %v46 = vsel %vm45, %v40, %v43
    %v47 = vld [vmem:[#allocation2] sm:$0xff]
    %v48 = vadd.f32 %v47, %v46
    %vm49 = vcmask 523264
    %50 = vst.msk [vmem:[#allocation7] sm:$0xff] %vm49, %v48
    // Predicated region
    $region18: #{tpu_custom_call.1} parent=1 // pred_check
      _
    $region19: #{tpu_custom_call.1} parent=1 // pred_check_branch
      %52 = sbr.rel (0) target = $region21
    $region20: #{tpu_custom_call.1} parent=1 // pred_region
      %54 = vsyncadd [#allocation4], 0
      %s56 = sshll.u32 [#allocation7], 4
      %s57 = int_to_ptr.vmem [resolvable:$true] %s56
      %s58 = sshll.u32 %s2, 4
      %s59 = int_to_ptr.hbm [resolvable:$true] %s58
      %61 = dma.vmem_to_hbm [thread:$0]  %s57, 128, %s59, [#allocation4]
    $region21: #{tpu_custom_call.1} parent=1 // pred_fallthru
      _
    // Predicated region
    $region22: #{tpu_custom_call.1} parent=1 // pred_check
      _
    $region23: #{tpu_custom_call.1} parent=1 // pred_check_branch
      %63 = sbr.rel (0) target = $region25
    $region24: #{tpu_custom_call.1} parent=1 // pred_region
      %65 = dma.done [#allocation4], 128
    $region25: #{tpu_custom_call.1} parent=1 // pred_fallthru
      _
    %66 = vsyncpa [#allocation3], 1
    %67 = vsyncpa [#allocation6], 1
    %68 = vsyncpa [#allocation4], 1

</llo_original>
